<compile_context>
chip_gen: v6e
topology: v6e:2x2x1
jax: 0.10.0
libtpu: 0.0.40
codegen_flags: <defaults>
</compile_context>

<pallas_src>
import functools

import jax
import jax.numpy as jnp
from jax.experimental import pallas as pl
from jax.experimental.pallas import tpu as pltpu


def _round_up(x, m):
    return ((x + m - 1) // m) * m


# ---------------------------------------------------------------------------
# Kernel 1: tiled fc1 (bf16 MXU, f32 accum) + per-batch-tile BN stat partials.
# grid = (batch_tiles, k_tiles); k is the reduction ("arbitrary") axis.
# ---------------------------------------------------------------------------
def fc1_stats_kernel(x_ref, w1_ref, h_ref, psum_ref, psumsq_ref, acc_ref):
    k = pl.program_id(1)
    nk = pl.num_programs(1)

    @pl.when(k == 0)
    def _():
        acc_ref[...] = jnp.zeros_like(acc_ref)

    acc_ref[...] += jnp.dot(x_ref[...], w1_ref[...],
                            preferred_element_type=jnp.float32)

    @pl.when(k == nk - 1)
    def _():
        acc = acc_ref[...]
        h_ref[...] = acc.astype(h_ref.dtype)
        s = jnp.sum(acc, axis=0, keepdims=True)            # f32 column sums
        ss = jnp.sum(acc * acc, axis=0, keepdims=True)     # f32 column sum-of-squares
        psum_ref[...] = jnp.broadcast_to(s, psum_ref.shape)
        psumsq_ref[...] = jnp.broadcast_to(ss, psumsq_ref.shape)


# ---------------------------------------------------------------------------
# Kernel 2: BN affine (+ optional ReLU) in f32, then weight-normed fc2 on MXU.
# grid = (batch_tiles,), fully "parallel".
# ---------------------------------------------------------------------------
def bn_fc2_kernel(h_ref, scale_ref, shift_ref, w2_ref, b2_ref, out_ref, *,
                  apply_affine, apply_relu):
    h = h_ref[...]
    if apply_affine:
        h = h.astype(jnp.float32) * scale_ref[...] + shift_ref[...]
    if apply_relu:
        h = jnp.maximum(h, 0.0)
    out = jnp.dot(h.astype(w2_ref.dtype), w2_ref[...],
                  preferred_element_type=jnp.float32) + b2_ref[...]
    out_ref[...] = out.astype(out_ref.dtype)


def bottleneck_mlp(x, params, *, type1='bn', batch_tile=256, k_tile=512):
    assert type1 in ['bn', 'bn_relu', 'bn_relu_drop']
    assert batch_tile % 16 == 0 and k_tile % 128 == 0
    apply_relu = 'relu' in type1
    # TODO(synk): Dropout(p=0.5) for type1='bn_relu_drop' (training-mode stochastic
    # masking) is not implemented; the default 'bn' and 'bn_relu' paths are complete.

    f32, bf16 = jnp.float32, jnp.bfloat16
    eps = 1e-5

    B, F = x.shape
    D = params['w1'].shape[1]
    C = params['v2'].shape[1]

    # Padded, lane-dense sizes and tile choices.
    Dp = _round_up(D, 128)
    Cp = _round_up(C, 128)
    TK = min(k_tile, _round_up(F, 128))
    Fp = _round_up(F, TK)
    TM = min(batch_tile, _round_up(B, 16))
    Bp = _round_up(B, TM)
    n_bt = Bp // TM
    n_kt = Fp // TK

    # Zero-pad + cast MXU operands to bf16.  Padded rows/cols are exact zeros and
    # contribute nothing to fc1 or the BN statistics (b1 is dropped: BN's mean
    # subtraction cancels any per-column bias added before it).
    xp = jnp.zeros((Bp, Fp), bf16).at[:B, :F].set(x.astype(bf16))
    w1p = jnp.zeros((Fp, Dp), bf16).at[:F, :D].set(params['w1'].astype(bf16))

    # ---- pass 1: fc1 + per-tile BN statistic partials ------------------------
    vmem1 = (2 * TM * TK * 2 + 2 * TK * Dp * 2 + 2 * TM * Dp * 2
             + 4 * 8 * Dp * 4 + TM * Dp * 4)
    vmem1 = int(min(max(2 * vmem1, 16 * 2**20), 32 * 2**20))
    h, psum, psumsq = pl.pallas_call(
        fc1_stats_kernel,
        out_shape=(
            jax.ShapeDtypeStruct((Bp, Dp), bf16),          # h = x @ w1
            jax.ShapeDtypeStruct((n_bt * 8, Dp), f32),     # per-tile column sums
            jax.ShapeDtypeStruct((n_bt * 8, Dp), f32),     # per-tile column sumsq
        ),
        grid_spec=pltpu.PrefetchScalarGridSpec(
            num_scalar_prefetch=0,
            grid=(n_bt, n_kt),
            in_specs=[
                pl.BlockSpec((TM, TK), lambda i, k: (i, k)),
                pl.BlockSpec((TK, Dp), lambda i, k: (k, 0)),
            ],
            out_specs=[
                pl.BlockSpec((TM, Dp), lambda i, k: (i, 0)),
                pl.BlockSpec((8, Dp), lambda i, k: (i, 0)),
                pl.BlockSpec((8, Dp), lambda i, k: (i, 0)),
            ],
            scratch_shapes=[pltpu.VMEM((TM, Dp), f32)],
        ),
        compiler_params=pltpu.CompilerParams(
            dimension_semantics=("parallel", "arbitrary"),
            vmem_limit_bytes=vmem1,
        ),
        cost_estimate=pl.CostEstimate(
            flops=2 * Bp * Fp * Dp,
            transcendentals=0,
            bytes_accessed=(Bp * Fp * 2 + n_bt * Fp * Dp * 2
                            + Bp * Dp * 2 + 2 * n_bt * 8 * Dp * 4),
        ),
    )(xp, w1p)

    # ---- tiny one-shot glue (O(D), O(D*C)): BN stats, affine fold, weight norm ----
    col_sum = jnp.sum(psum.reshape(n_bt, 8, Dp)[:, 0, :], axis=0)
    col_sumsq = jnp.sum(psumsq.reshape(n_bt, 8, Dp)[:, 0, :], axis=0)
    mean = col_sum / B
    var = jnp.maximum(col_sumsq / B - mean * mean, 0.0)        # biased (training) var
    gamma = jnp.ones((Dp,), f32).at[:D].set(params['gamma'].reshape(-1).astype(f32))
    beta = jnp.zeros((Dp,), f32).at[:D].set(params['beta'].reshape(-1).astype(f32))
    scale = gamma * jax.lax.rsqrt(var + eps)                   # (Dp,) f32
    shift = beta - mean * scale                                # (Dp,) f32

    v2 = params['v2'].astype(f32)                              # (D, C), pre-transposed
    col_norm = jnp.sqrt(jnp.sum(v2 * v2, axis=0, keepdims=True))
    w2 = v2 * (params['g2'].astype(f32) / col_norm)            # weight_norm over dim=0
    b2 = params['b2'].reshape(-1).astype(f32)                  # (C,)

    if apply_relu:
        apply_affine = True
        scale_in = scale.reshape(1, Dp)
        shift_in = shift.reshape(1, Dp)
    else:
        # No ReLU between BN and fc2 -> fold the BN affine into w2 / b2 so the
        # second kernel is a pure bf16 matmul + f32 bias.
        apply_affine = False
        b2 = shift[:D] @ w2 + b2
        w2 = scale[:D, None] * w2
        scale_in = jnp.ones((1, Dp), f32)   # unused by the kernel in this mode
        shift_in = jnp.zeros((1, Dp), f32)

    w2p = jnp.zeros((Dp, Cp), bf16).at[:D, :C].set(w2.astype(bf16))
    b2p = jnp.zeros((1, Cp), f32).at[0, :C].set(b2)

    # ---- pass 2: BN affine (+ReLU) + fc2 -------------------------------------
    vmem2 = (2 * TM * Dp * 2 + 2 * Dp * Cp * 2 + 2 * TM * Cp * 4
             + 2 * (2 * Dp + Cp) * 4)
    vmem2 = int(min(max(2 * vmem2, 16 * 2**20), 32 * 2**20))
    out = pl.pallas_call(
        functools.partial(bn_fc2_kernel,
                          apply_affine=apply_affine, apply_relu=apply_relu),
        out_shape=jax.ShapeDtypeStruct((Bp, Cp), f32),
        grid_spec=pltpu.PrefetchScalarGridSpec(
            num_scalar_prefetch=0,
            grid=(n_bt,),
            in_specs=[
                pl.BlockSpec((TM, Dp), lambda i: (i, 0)),
                pl.BlockSpec((1, Dp), lambda i: (0, 0)),
                pl.BlockSpec((1, Dp), lambda i: (0, 0)),
                pl.BlockSpec((Dp, Cp), lambda i: (0, 0)),
                pl.BlockSpec((1, Cp), lambda i: (0, 0)),
            ],
            out_specs=pl.BlockSpec((TM, Cp), lambda i: (i, 0)),
        ),
        compiler_params=pltpu.CompilerParams(
            dimension_semantics=("parallel",),
            vmem_limit_bytes=vmem2,
        ),
        cost_estimate=pl.CostEstimate(
            flops=2 * Bp * Dp * Cp,
            transcendentals=0,
            bytes_accessed=Bp * Dp * 2 + Dp * Cp * 2 + Bp * Cp * 4,
        ),
    )(h, scale_in, shift_in, w2p, b2p)

    return out[:B, :C]


def init_params(key, feature_dim, bottleneck_dim, num_classes):
    """Deterministic synthetic init matching BottleNeckMLP's parameter shapes.

    Weights are pre-transposed to (in_dim, out_dim); fc2's weight_norm over dim=0
    of the (num_classes, bottleneck) weight is a per-column norm of v2 here.
    """
    k1, k2, k3, k4, k5 = jax.random.split(key, 5)
    std1 = (2.0 / (feature_dim + bottleneck_dim)) ** 0.5       # xavier_normal
    w1 = jax.random.normal(k1, (feature_dim, bottleneck_dim), jnp.float32) * std1
    # Non-zero b1 (the real module zero-inits it); the kernel drops it because
    # training-mode BatchNorm cancels it — the reference keeps it to prove that.
    b1 = 0.1 * jax.random.normal(k4, (1, bottleneck_dim), jnp.float32)
    gamma = 1.0 + 0.02 * jax.random.normal(k2, (1, bottleneck_dim), jnp.float32)
    beta = 0.05 * jax.random.normal(k5, (1, bottleneck_dim), jnp.float32)
    v2 = jax.random.normal(k3, (bottleneck_dim, num_classes), jnp.float32) * 0.1
    g2 = jnp.sqrt(jnp.sum(v2 * v2, axis=0, keepdims=True)) * 1.1   # exercise g path
    b2 = 0.01 * jnp.ones((1, num_classes), jnp.float32)
    return dict(w1=w1, b1=b1, gamma=gamma, beta=beta, v2=v2, g2=g2, b2=b2)


def reference(x, p, type1='bn'):
    """Pure f32 JAX reference matching the PyTorch module's forward (training BN)."""
    h = x @ p['w1'] + p['b1']
    mean = h.mean(0, keepdims=True)
    var = ((h - mean) ** 2).mean(0, keepdims=True)
    h = (h - mean) / jnp.sqrt(var + 1e-5) * p['gamma'] + p['beta']
    if 'relu' in type1:
        h = jnp.maximum(h, 0.0)
    w2 = p['v2'] * (p['g2'] / jnp.sqrt(jnp.sum(p['v2'] ** 2, axis=0, keepdims=True)))
    return h @ w2 + p['b2']


if __name__ == "__main__":
    key = jax.random.PRNGKey(0)
    kx, kp = jax.random.split(key)

    # Small shapes, but sized (after padding) to exercise multiple batch tiles
    # (Bp=48 / TM=16 -> 3) and multiple fc1 K tiles (Fp=384 / TK=128 -> 3), so the
    # cross-tile BatchNorm statistics reduction is actually tested.
    B, feature_dim, bottleneck_dim, num_classes = 40, 320, 24, 10
    x = jax.random.normal(kx, (B, feature_dim), jnp.float32)
    params = init_params(kp, feature_dim, bottleneck_dim, num_classes)

    for type1 in ('bn', 'bn_relu'):
        out = bottleneck_mlp(x, params, type1=type1, batch_tile=16, k_tile=128)
        out = jax.block_until_ready(out)
        ref = reference(x, params, type1=type1)
        assert out.shape == (B, num_classes)
        max_err = float(jnp.max(jnp.abs(out - ref)))
        # bf16 MXU operands (f32 accumulation) -> bf16-level tolerance vs f32 ref.
        assert jnp.allclose(out, ref, atol=7e-2, rtol=7e-2), (type1, max_err)

    print("KERNEL_OK")
</pallas_src>

<mosaic_0001>
module attributes {stable_mosaic.version = 11 : i64} {
  func.func @fc1_stats_kernel(%arg0: i32, %arg1: i32, %arg2: memref<16x128xbf16, #tpu.memory_space<vmem>>, %arg3: memref<128x128xbf16, #tpu.memory_space<vmem>>, %arg4: memref<16x128xbf16, #tpu.memory_space<vmem>>, %arg5: memref<8x128xf32, #tpu.memory_space<vmem>>, %arg6: memref<8x128xf32, #tpu.memory_space<vmem>>, %arg7: memref<16x128xf32, #tpu.memory_space<vmem>>) attributes {dimension_semantics = [#tpu.dimension_semantics<parallel>, #tpu.dimension_semantics<arbitrary>], iteration_bounds = array<i64: 3, 3>, scalar_prefetch = 0 : i64, scratch_operands = 1 : i64, tpu.core_type = #tpu.core_type<tc>, window_params = [{transform_indices = @transform_0, window_bounds = array<i64: 16, 128>}, {transform_indices = @transform_1, window_bounds = array<i64: 128, 128>}, {transform_indices = @transform_2, window_bounds = array<i64: 16, 128>}, {transform_indices = @transform_3, window_bounds = array<i64: 8, 128>}, {transform_indices = @transform_4, window_bounds = array<i64: 8, 128>}]} {
    %c0_i32 = arith.constant 0 : i32
    %0 = arith.cmpi eq, %arg1, %c0_i32 : i32
    %1 = arith.extui %0 : i1 to i32
    %c0_i32_0 = arith.constant 0 : i32
    %2 = arith.cmpi ne, %1, %c0_i32_0 : i32
    scf.if %2 {
      %cst_9 = arith.constant 0.000000e+00 : f32
      %12 = vector.broadcast %cst_9 : f32 to vector<16x128xf32>
      %c0_10 = arith.constant 0 : index
      %c0_11 = arith.constant 0 : index
      %13 = vector.load %arg7[%c0_10, %c0_11] : memref<16x128xf32, #tpu.memory_space<vmem>>, vector<16x128xf32>
      tpu.vector_store %arg7[%c0_10, %c0_11], %12 {strides = array<i32>} : memref<16x128xf32, #tpu.memory_space<vmem>>, vector<16x128xf32>,
    } else {
    }
    %c0 = arith.constant 0 : index
    %c0_1 = arith.constant 0 : index
    %3 = vector.load %arg7[%c0, %c0_1] : memref<16x128xf32, #tpu.memory_space<vmem>>, vector<16x128xf32>
    %c0_2 = arith.constant 0 : index
    %c0_3 = arith.constant 0 : index
    %4 = vector.load %arg2[%c0_2, %c0_3] : memref<16x128xbf16, #tpu.memory_space<vmem>>, vector<16x128xbf16>
    %c0_4 = arith.constant 0 : index
    %c0_5 = arith.constant 0 : index
    %5 = vector.load %arg3[%c0_4, %c0_5] : memref<128x128xbf16, #tpu.memory_space<vmem>>, vector<128x128xbf16>
    %cst = arith.constant dense<0.000000e+00> : vector<16x128xf32>
    %6 = tpu.matmul %4, %5, %cst {dimension_numbers = #tpu.dot_dimension_numbers<[1], [0], [0], [1], [0, 0, 1, 1], [], []>} : vector<16x128xbf16>, vector<128x128xbf16>, vector<16x128xf32> -> vector<16x128xf32>
    %7 = arith.addf %3, %6 : vector<16x128xf32>
    %c0_6 = arith.constant 0 : index
    %c0_7 = arith.constant 0 : index
    %8 = vector.load %arg7[%c0_6, %c0_7] : memref<16x128xf32, #tpu.memory_space<vmem>>, vector<16x128xf32>
    tpu.vector_store %arg7[%c0_6, %c0_7], %7 {strides = array<i32>} : memref<16x128xf32, #tpu.memory_space<vmem>>, vector<16x128xf32>,
    %c2_i32 = arith.constant 2 : i32
    %9 = arith.cmpi eq, %arg1, %c2_i32 : i32
    %10 = arith.extui %9 : i1 to i32
    %c0_i32_8 = arith.constant 0 : i32
    %11 = arith.cmpi ne, %10, %c0_i32_8 : i32
    scf.if %11 {
      %c0_9 = arith.constant 0 : index
      %c0_10 = arith.constant 0 : index
      %12 = vector.load %arg7[%c0_9, %c0_10] : memref<16x128xf32, #tpu.memory_space<vmem>>, vector<16x128xf32>
      %13 = arith.truncf %12 : vector<16x128xf32> to vector<16x128xbf16>
      %c0_11 = arith.constant 0 : index
      %c0_12 = arith.constant 0 : index
      %14 = vector.load %arg4[%c0_11, %c0_12] : memref<16x128xbf16, #tpu.memory_space<vmem>>, vector<16x128xbf16>
      tpu.vector_store %arg4[%c0_11, %c0_12], %13 {strides = array<i32>} : memref<16x128xbf16, #tpu.memory_space<vmem>>, vector<16x128xbf16>,
      %cst_13 = arith.constant dense<0.000000e+00> : vector<128xf32>
      %15 = vector.multi_reduction <add>, %12, %cst_13 [0] : vector<16x128xf32> to vector<128xf32>
      %16 = vector.shape_cast %15 : vector<128xf32> to vector<1x128xf32>
      %17 = arith.mulf %12, %12 : vector<16x128xf32>
      %cst_14 = arith.constant dense<0.000000e+00> : vector<128xf32>
      %18 = vector.multi_reduction <add>, %17, %cst_14 [0] : vector<16x128xf32> to vector<128xf32>
      %19 = vector.shape_cast %18 : vector<128xf32> to vector<1x128xf32>
      %20 = vector.shape_cast %16 : vector<1x128xf32> to vector<1x128xf32>
      %21 = vector.broadcast %20 : vector<1x128xf32> to vector<8x128xf32>
      %c0_15 = arith.constant 0 : index
      %c0_16 = arith.constant 0 : index
      %22 = vector.load %arg5[%c0_15, %c0_16] : memref<8x128xf32, #tpu.memory_space<vmem>>, vector<8x128xf32>
      tpu.vector_store %arg5[%c0_15, %c0_16], %21 {strides = array<i32>} : memref<8x128xf32, #tpu.memory_space<vmem>>, vector<8x128xf32>,
      %23 = vector.shape_cast %19 : vector<1x128xf32> to vector<1x128xf32>
      %24 = vector.broadcast %23 : vector<1x128xf32> to vector<8x128xf32>
      %c0_17 = arith.constant 0 : index
      %c0_18 = arith.constant 0 : index
      %25 = vector.load %arg6[%c0_17, %c0_18] : memref<8x128xf32, #tpu.memory_space<vmem>>, vector<8x128xf32>
      tpu.vector_store %arg6[%c0_17, %c0_18], %24 {strides = array<i32>} : memref<8x128xf32, #tpu.memory_space<vmem>>, vector<8x128xf32>,
    } else {
    }
    return
  }
  func.func @transform_0(%arg0: i32, %arg1: i32) -> (i32, i32) {
    %c0_i32 = arith.constant 0 : i32
    return %arg0, %arg1 : i32, i32
  }
  func.func @transform_1(%arg0: i32, %arg1: i32) -> (i32, i32) {
    %c0_i32 = arith.constant 0 : i32
    %c0_i32_0 = arith.constant 0 : i32
    return %arg1, %c0_i32 : i32, i32
  }
  func.func @transform_2(%arg0: i32, %arg1: i32) -> (i32, i32) {
    %c0_i32 = arith.constant 0 : i32
    %c0_i32_0 = arith.constant 0 : i32
    return %arg0, %c0_i32 : i32, i32
  }
  func.func @transform_3(%arg0: i32, %arg1: i32) -> (i32, i32) {
    %c0_i32 = arith.constant 0 : i32
    %c0_i32_0 = arith.constant 0 : i32
    return %arg0, %c0_i32 : i32, i32
  }
  func.func @transform_4(%arg0: i32, %arg1: i32) -> (i32, i32) {
    %c0_i32 = arith.constant 0 : i32
    %c0_i32_0 = arith.constant 0 : i32
    return %arg0, %c0_i32 : i32, i32
  }
}

</mosaic_0001>

<llo_original>
// kernel: tpu_custom_call.1
$region0: #{tpu_custom_call.1}
  #allocation0 [shape = 'u32[]', space=smem, size = 0x4, offset = 0x4, fixed_abs, tag = 'smem constant byte address 0x4 - core index']
  #allocation1 [shape = 'u32[144,128]{1,0:T(1,128)}', space=vmem, size = 0x12000, scoped, tag = 'internal scratch']
  #allocation2 [shape = 'f32[16,128]{1,0:T(8,128)}', space=vmem, size = 0x2000, scoped, tag = 'scratch operand']
  %s0 = inlined_call_operand.hbm [shape: bf16[48,384], index: 0, kind: input, shape index: {}]
  %s1 = inlined_call_operand.hbm [shape: bf16[384,128], index: 1, kind: input, shape index: {}]
  %s2 = inlined_call_operand.hbm [shape: bf16[48,128], index: 2, kind: output, shape index: {0}]
  %s3 = inlined_call_operand.hbm [shape: f32[24,128], index: 3, kind: output, shape index: {1}]
  %s4 = inlined_call_operand.hbm [shape: f32[24,128], index: 4, kind: output, shape index: {2}]
  %5 = xla_tuple %s2, %s3, %s4
  %s6 = sld [smem:[#allocation0]]
  $region73: #{tpu_custom_call.1} parent=0
    _
  %s8 = ssub.s32 1, %s6
  %s9 = scalar_select 0, %s8, %s6
  $region1: #{tpu_custom_call.1} parent=0
    #allocation3 [shape = 'u8[8192]{0}', space=vmem, size = 0x2000, scoped, tag = 'input window, operand 0']
    #allocation4 [shape = 's32[2]{0}', space=sflag, size = 0x8, scoped, tag = 'scoped memory for tpu_custom_call.1']
    #allocation5 [shape = 's32[2]{0}', space=sflag, size = 0x8, scoped, tag = 'scoped memory for tpu_custom_call.1']
    #allocation6 [shape = 'u8[65536]{0}', space=vmem, size = 0x10000, scoped, tag = 'input window, operand 1']
    #allocation7 [shape = 's32[2]{0}', space=sflag, size = 0x8, scoped, tag = 'scoped memory for tpu_custom_call.1']
    #allocation8 [shape = 'u8[8192]{0}', space=vmem, size = 0x2000, scoped, tag = 'output window, operand 0']
    #allocation9 [shape = 'u8[8192]{0}', space=vmem, size = 0x2000, scoped, tag = 'output window, operand 1']
    #allocation10 [shape = 's32[2]{0}', space=sflag, size = 0x8, scoped, tag = 'scoped memory for tpu_custom_call.1']
    #allocation11 [shape = 'u8[8192]{0}', space=vmem, size = 0x2000, scoped, tag = 'output window, operand 2']
    %10 = vsyncpa [#allocation4], 0
    %s11 = scalar_lea.sflag [#allocation4], 1
    %12 = vsyncpa %s11, 0
    %13 = vsyncpa [#allocation7], 0
    %s14 = scalar_lea.sflag [#allocation7], 1
    %15 = vsyncpa %s14, 0
    %16 = vsyncpa [#allocation5], 0
    %s17 = scalar_lea.sflag [#allocation5], 1
    %18 = vsyncpa %s17, 0
    %19 = vsyncpa [#allocation10], 0
    %s20 = scalar_lea.sflag [#allocation10], 1
    %21 = vsyncpa %s20, 0
    loop: start=0, step=1, limit=11
    $region2: #{tpu_custom_call.1} parent=1 // loop_pre_header
      _
    $region3: #{tpu_custom_call.1} parent=1 // loop_header
      %s23 = sphi 0, %s27
      %p24 = scmp.ge.s32.totalorder %s23, 11
      %s30 = sphi 0, %s42
      %s31 = sphi 0, %s38
      %s32 = sphi 0, %s30
      %s33 = sphi 0, %s31
      %s34 = sphi 0, %s32
      %s35 = sphi 0, %s33
      %s47 = sphi 0, %s49
      %s50 = sphi 0, %s47
      %s51 = sphi 0, %s50
      %s67 = sphi 0, %s51
      %s73 = sphi 0, %s75
      %s76 = sphi 0, %s73
      %s77 = sphi 0, %s76
      %s93 = sphi 0, %s77
      %s99 = sphi 0, %s101
      %s102 = sphi 0, %s99
      %s103 = sphi 0, %s102
      %s119 = sphi 0, %s103
      %s125 = sphi 0, %s127
      %s128 = sphi 0, %s125
      %s129 = sphi 0, %s128
      %s145 = sphi 0, %s129
      %s151 = sphi 0, %s153
      %s154 = sphi 0, %s151
      %s155 = sphi 0, %s154
      %s171 = sphi 0, %s155
    $region4: #{tpu_custom_call.1} parent=1 // loop_header_branch
      %26 = sbr.rel (%p24) target = $region8
    $region5: #{tpu_custom_call.1} parent=1 // loop_body
      %s28 = ssub.s32 %s23, 1
      %s29 = ssub.s32 %s23, 2
      %s36 = sadd.s32 1, %s31
      %p37 = scmp.ge.s32.totalorder %s36, 3
      %s38 = scalar_select %p37, 0, %s36
      %s39 = sadd.s32 1, %s30
      %s40 = scalar_select %p37, %s39, %s30
      %p41 = scmp.ge.s32.totalorder %s40, 3
      %s42 = scalar_select %p41, 0, %s40
      %s43 = ssub.s32 %s30, %s42
      %s44 = ssub.s32 %s31, %s38
      %s45 = sor.u32 %s43, %s44
      %p46 = scmp.eq.s32.totalorder %s45, 0
      %s48 = sadd.s32 %s47, 1
      %s49 = scalar_select %p46, %s47, %s48
      %p52 = pneg %p46
      %p53 = scmp.eq.s32.totalorder %s23, 8
      %p54 = por %p52, %p53
      %p55 = scmp.ne.s32.totalorder %s47, %s50
      %p56 = scmp.eq.s32.totalorder %s23, 0
      %p57 = por %p55, %p56
      %p58 = scmp.ne.s32.totalorder %s47, %s50
      %p59 = scmp.eq.s32.totalorder %s28, 8
      %p60 = por %p58, %p59
      %p61 = scmp.ne.s32.totalorder %s50, %s51
      %p62 = scmp.eq.s32.totalorder %s28, 0
      %p63 = por %p61, %p62
      %p64 = scmp.ne.s32.totalorder %s50, %s51
      %p65 = scmp.eq.s32.totalorder %s29, 8
      %p66 = por %p64, %p65
      %p68 = scmp.ne.s32.totalorder %s51, %s67
      %p69 = scmp.eq.s32.totalorder %s29, 0
      %p70 = por %p68, %p69
      %s71 = ssub.s32 %s31, %s38
      %p72 = scmp.eq.s32.totalorder %s71, 0
      %s74 = sadd.s32 %s73, 1
      %s75 = scalar_select %p72, %s73, %s74
      %p78 = pneg %p72
      %p79 = scmp.eq.s32.totalorder %s23, 8
      %p80 = por %p78, %p79
      %p81 = scmp.ne.s32.totalorder %s73, %s76
      %p82 = scmp.eq.s32.totalorder %s23, 0
      %p83 = por %p81, %p82
      %p84 = scmp.ne.s32.totalorder %s73, %s76
      %p85 = scmp.eq.s32.totalorder %s28, 8
      %p86 = por %p84, %p85
      %p87 = scmp.ne.s32.totalorder %s76, %s77
      %p88 = scmp.eq.s32.totalorder %s28, 0
      %p89 = por %p87, %p88
      %p90 = scmp.ne.s32.totalorder %s76, %s77
      %p91 = scmp.eq.s32.totalorder %s29, 8
      %p92 = por %p90, %p91
      %p94 = scmp.ne.s32.totalorder %s77, %s93
      %p95 = scmp.eq.s32.totalorder %s29, 0
      %p96 = por %p94, %p95
      %s97 = ssub.s32 %s30, %s42
      %p98 = scmp.eq.s32.totalorder %s97, 0
      %s100 = sadd.s32 %s99, 1
      %s101 = scalar_select %p98, %s99, %s100
      %p104 = pneg %p98
      %p105 = scmp.eq.s32.totalorder %s23, 8
      %p106 = por %p104, %p105
      %p107 = scmp.ne.s32.totalorder %s99, %s102
      %p108 = scmp.eq.s32.totalorder %s23, 0
      %p109 = por %p107, %p108
      %p110 = scmp.ne.s32.totalorder %s99, %s102
      %p111 = scmp.eq.s32.totalorder %s28, 8
      %p112 = por %p110, %p111
      %p113 = scmp.ne.s32.totalorder %s102, %s103
      %p114 = scmp.eq.s32.totalorder %s28, 0
      %p115 = por %p113, %p114
      %p116 = scmp.ne.s32.totalorder %s102, %s103
      %p117 = scmp.eq.s32.totalorder %s29, 8
      %p118 = por %p116, %p117
      %p120 = scmp.ne.s32.totalorder %s103, %s119
      %p121 = scmp.eq.s32.totalorder %s29, 0
      %p122 = por %p120, %p121
      %s123 = ssub.s32 %s30, %s42
      %p124 = scmp.eq.s32.totalorder %s123, 0
      %s126 = sadd.s32 %s125, 1
      %s127 = scalar_select %p124, %s125, %s126
      %p130 = pneg %p124
      %p131 = scmp.eq.s32.totalorder %s23, 8
      %p132 = por %p130, %p131
      %p133 = scmp.ne.s32.totalorder %s125, %s128
      %p134 = scmp.eq.s32.totalorder %s23, 0
      %p135 = por %p133, %p134
      %p136 = scmp.ne.s32.totalorder %s125, %s128
      %p137 = scmp.eq.s32.totalorder %s28, 8
      %p138 = por %p136, %p137
      %p139 = scmp.ne.s32.totalorder %s128, %s129
      %p140 = scmp.eq.s32.totalorder %s28, 0
      %p141 = por %p139, %p140
      %p142 = scmp.ne.s32.totalorder %s128, %s129
      %p143 = scmp.eq.s32.totalorder %s29, 8
      %p144 = por %p142, %p143
      %p146 = scmp.ne.s32.totalorder %s129, %s145
      %p147 = scmp.eq.s32.totalorder %s29, 0
      %p148 = por %p146, %p147
      %s149 = ssub.s32 %s30, %s42
      %p150 = scmp.eq.s32.totalorder %s149, 0
      %s152 = sadd.s32 %s151, 1
      %s153 = scalar_select %p150, %s151, %s152
      %p156 = pneg %p150
      %p157 = scmp.eq.s32.totalorder %s23, 8
      %p158 = por %p156, %p157
      %p159 = scmp.ne.s32.totalorder %s151, %s154
      %p160 = scmp.eq.s32.totalorder %s23, 0
      %p161 = por %p159, %p160
      %p162 = scmp.ne.s32.totalorder %s151, %s154
      %p163 = scmp.eq.s32.totalorder %s28, 8
      %p164 = por %p162, %p163
      %p165 = scmp.ne.s32.totalorder %s154, %s155
      %p166 = scmp.eq.s32.totalorder %s28, 0
      %p167 = por %p165, %p166
      %p168 = scmp.ne.s32.totalorder %s154, %s155
      %p169 = scmp.eq.s32.totalorder %s29, 8
      %p170 = por %p168, %p169
      %p172 = scmp.ne.s32.totalorder %s155, %s171
      %p173 = scmp.eq.s32.totalorder %s29, 0
      %p174 = por %p172, %p173
      %p175 = scmp.le.s32.totalorder 1, %s23
      %p176 = scmp.lt.s32.totalorder %s23, 10
      %p177 = pnand %p175, %p176
      %p178 = pneg %p177
      // Predicated region
      $region9: #{tpu_custom_call.1} parent=5 // pred_check
        _
      $region10: #{tpu_custom_call.1} parent=5 // pred_check_branch
        %180 = sbr.rel (%p177) target = $region12
      $region11: #{tpu_custom_call.1} parent=5 // pred_region
        %s181 = ssub.s32 %s23, 1
      $region12: #{tpu_custom_call.1} parent=5 // pred_fallthru
        _
      %p182 = scmp.lt.s32.totalorder %s23, 9
      // Predicated region
      $region13: #{tpu_custom_call.1} parent=5 // pred_check
        %p183 = pneg %p182
      $region14: #{tpu_custom_call.1} parent=5 // pred_check_branch
        %185 = sbr.rel (%p183) target = $region16
      $region15: #{tpu_custom_call.1} parent=5 // pred_region
        // Predicated region
        $region17: #{tpu_custom_call.1} parent=15 // pred_check
          %p186 = pneg %p57
        $region18: #{tpu_custom_call.1} parent=15 // pred_check_branch
          %188 = sbr.rel (%p186) target = $region20
        $region19: #{tpu_custom_call.1} parent=15 // pred_region
          %s189 = sand.u32 %s47, 1
          %s190 = scalar_lea.sflag [#allocation4], %s189
          %s191 = sand.u32 %s47, 1
          %s192 = smul.addr %s191, 8
          %s193 = scalar_lea.vmem [#allocation3], %s192
          %s194 = smul.u32 2, %s30
          %s196 = ssub.s32 128, 128
          %197 = vsyncadd %s190, %s196
          %s198 = smul.addr %s194, 3
          %s199 = sadd.s32 %s31, %s198
          %s200 = smul.addr %s199, 64
          %s201 = scalar_lea.hbm %s0, %s200
          %s202 = sshll.u32 %s193, 4
          %s203 = int_to_ptr.vmem [resolvable:$true] %s202
          %208 = dma.hbm_to_vmem [thread:$0]  %s201, 128, %s203, %s190, 192, 64, 4
        $region20: #{tpu_custom_call.1} parent=15 // pred_fallthru
          _
        // Predicated region
        $region21: #{tpu_custom_call.1} parent=15 // pred_check
          %p209 = pneg %p83
        $region22: #{tpu_custom_call.1} parent=15 // pred_check_branch
          %211 = sbr.rel (%p209) target = $region24
        $region23: #{tpu_custom_call.1} parent=15 // pred_region
          %s212 = sand.u32 %s73, 1
          %s213 = scalar_lea.sflag [#allocation7], %s212
          %s214 = sand.u32 %s73, 1
          %s215 = smul.addr %s214, 64
          %s216 = scalar_lea.vmem [#allocation6], %s215
          %s217 = smul.u32 16, %s31
          %s219 = ssub.s32 1024, 1024
          %220 = vsyncadd %s213, %s219
          %s221 = smul.addr %s217, 64
          %s222 = scalar_lea.hbm %s1, %s221
          %s223 = sshll.u32 %s216, 4
          %s224 = int_to_ptr.vmem [resolvable:$true] %s223
          %229 = dma.hbm_to_vmem [thread:$0]  %s222, 1024, %s224, %s213, 64, 64, 4
        $region24: #{tpu_custom_call.1} parent=15 // pred_fallthru
          _
      $region16: #{tpu_custom_call.1} parent=5 // pred_fallthru
        _
      %p230 = scmp.le.s32.totalorder 1, %s23
      %p231 = scmp.lt.s32.totalorder %s23, 10
      %p232 = pnand %p230, %p231
      %p233 = pneg %p232
      // Predicated region
      $region25: #{tpu_custom_call.1} parent=5 // pred_check
        _
      $region26: #{tpu_custom_call.1} parent=5 // pred_check_branch
        %235 = sbr.rel (%p232) target = $region28
      $region27: #{tpu_custom_call.1} parent=5 // pred_region
        %s236 = ssub.s32 %s23, 1
        %s237 = sand.u32 %s50, 1
        %s238 = scalar_lea.sflag [#allocation4], %s237
        %s239 = sand.u32 %s50, 1
        %s240 = smul.addr %s239, 8
        %s241 = scalar_lea.vmem [#allocation3], %s240
        // Predicated region
        $region29: #{tpu_custom_call.1} parent=27 // pred_check
          %p242 = pneg %p63
        $region30: #{tpu_custom_call.1} parent=27 // pred_check_branch
          %244 = sbr.rel (%p242) target = $region32
        $region31: #{tpu_custom_call.1} parent=27 // pred_region
          %245 = dma.done %s238, 128
        $region32: #{tpu_custom_call.1} parent=27 // pred_fallthru
          _
        %s246 = sand.u32 %s76, 1
        %s247 = scalar_lea.sflag [#allocation7], %s246
        %s248 = sand.u32 %s76, 1
        %s249 = smul.addr %s248, 64
        %s250 = scalar_lea.vmem [#allocation6], %s249
        // Predicated region
        $region33: #{tpu_custom_call.1} parent=27 // pred_check
          %p251 = pneg %p89
        $region34: #{tpu_custom_call.1} parent=27 // pred_check_branch
          %253 = sbr.rel (%p251) target = $region36
        $region35: #{tpu_custom_call.1} parent=27 // pred_region
          %254 = dma.done %s247, 1024
        $region36: #{tpu_custom_call.1} parent=27 // pred_fallthru
          _
        %s255 = sand.u32 %s50, 1
        %s256 = scalar_lea.sflag [#allocation4], %s255
        %s257 = sand.u32 %s50, 1
        %s258 = smul.addr %s257, 8
        %s259 = scalar_lea.vmem [#allocation3], %s258
        %p260 = pneg %p63
        %p261 = pneg %p60
        %s262 = sand.u32 %s76, 1
        %s263 = scalar_lea.sflag [#allocation7], %s262
        %s264 = sand.u32 %s76, 1
        %s265 = smul.addr %s264, 64
        %s266 = scalar_lea.vmem [#allocation6], %s265
        %p267 = pneg %p89
        %p268 = pneg %p86
        %p269 = pneg %p115
        %p270 = pneg %p112
        %s271 = sand.u32 %s102, 1
        %s272 = scalar_lea.sflag [#allocation5], %s271
        %s273 = sand.u32 %s102, 1
        %s274 = smul.addr %s273, 8
        %s275 = scalar_lea.vmem [#allocation8], %s274
        %p276 = pneg %p141
        %p277 = pneg %p138
        %s278 = sand.u32 %s28, 1
        %s279 = scalar_lea.sflag [#allocation10], %s278
        %s280 = sand.u32 %s128, 1
        %s281 = smul.addr %s280, 8
        %s282 = scalar_lea.vmem [#allocation9], %s281
        %p283 = pneg %p167
        %p284 = pneg %p164
        %s285 = sand.u32 %s28, 1
        %s286 = scalar_lea.sflag [#allocation10], %s285
        %s287 = sand.u32 %s154, 1
        %s288 = smul.addr %s287, 8
        %s289 = scalar_lea.vmem [#allocation11], %s288
        %s290 = smul.u32 2, %s32
        %s291 = smul.u32 16, %s33
        %s292 = smul.u32 2, %s32
        %p294 = scmp.eq.s32.totalorder %s33, 0
        // Predicated region
        $region37: #{tpu_custom_call.1} parent=27 // pred_check
          %p295 = pneg %p294
        $region38: #{tpu_custom_call.1} parent=27 // pred_check_branch
          %297 = sbr.rel (%p295) target = $region40
        $region39: #{tpu_custom_call.1} parent=27 // pred_region
          %298 = vst [vmem:[#allocation2] sm:$0xff] 0.0
          %299 = vst [vmem:[#allocation2 + $0x8] sm:$0xff] 0.0
        $region40: #{tpu_custom_call.1} parent=27 // pred_fallthru
          _
        %v300 = vld [vmem:[#allocation2] sm:$0xff]
        %v301 = vld [vmem:[#allocation2 + $0x8] sm:$0xff]
        %v302 = vld [vmem:[%s241] sm:$0xf]
        %v303 = vld [vmem:[%s241 + $0x4] sm:$0xf]
        %v304 = vld [vmem:[%s250] sm:$0xf]
        %v305 = vld [vmem:[%s250 + $0x4] sm:$0xf]
        %v306 = vld [vmem:[%s250 + $0x8] sm:$0xf]
        %v307 = vld [vmem:[%s250 + $0xc] sm:$0xf]
        %v308 = vld [vmem:[%s250 + $0x10] sm:$0xf]
        %v309 = vld [vmem:[%s250 + $0x14] sm:$0xf]
        %v310 = vld [vmem:[%s250 + $0x18] sm:$0xf]
        %v311 = vld [vmem:[%s250 + $0x1c] sm:$0xf]
        %v312 = vld [vmem:[%s250 + $0x20] sm:$0xf]
        %v313 = vld [vmem:[%s250 + $0x24] sm:$0xf]
        %v314 = vld [vmem:[%s250 + $0x28] sm:$0xf]
        %v315 = vld [vmem:[%s250 + $0x2c] sm:$0xf]
        %v316 = vld [vmem:[%s250 + $0x30] sm:$0xf]
        %v317 = vld [vmem:[%s250 + $0x34] sm:$0xf]
        %v318 = vld [vmem:[%s250 + $0x38] sm:$0xf]
        %v319 = vld [vmem:[%s250 + $0x3c] sm:$0xf]
        %v322 = vunpack.c.l.b16 %v302
        %v323 = vunpack.c.l.b16 %v303
        %v324 = vpack.c.b16 %v323, %v322
        %v342 = vunpack.c.l.b16 %v304
        %v343 = vunpack.c.l.b16 %v305
        %v344 = vunpack.c.l.b16 %v306
        %v345 = vunpack.c.l.b16 %v307
        %v346 = vunpack.c.l.b16 %v308
        %v347 = vunpack.c.l.b16 %v309
        %v348 = vunpack.c.l.b16 %v310
        %v349 = vunpack.c.l.b16 %v311
        %v350 = vunpack.c.l.b16 %v312
        %v351 = vunpack.c.l.b16 %v313
        %v352 = vunpack.c.l.b16 %v314
        %v353 = vunpack.c.l.b16 %v315
        %v354 = vunpack.c.l.b16 %v316
        %v355 = vunpack.c.l.b16 %v317
        %v356 = vunpack.c.l.b16 %v318
        %v357 = vunpack.c.l.b16 %v319
        %v358 = vpack.c.b16 %v343, %v342
        %v359 = vpack.c.b16 %v345, %v344
        %v360 = vpack.c.b16 %v347, %v346
        %v361 = vpack.c.b16 %v349, %v348
        %v362 = vpack.c.b16 %v351, %v350
        %v363 = vpack.c.b16 %v353, %v352
        %v364 = vpack.c.b16 %v355, %v354
        %v365 = vpack.c.b16 %v357, %v356
        %374 = vmatprep.subr.bf16.mxu0 0
        %375 = vmatpush1.bf16.msra.mxu0 %v365
        %376 = vmatprep.subr.bf16.mxu0 0
        %377 = vmatpush1.bf16.msra.mxu0 %v364
        %378 = vmatprep.subr.bf16.mxu0 0
        %379 = vmatpush1.bf16.msra.mxu0 %v363
        %380 = vmatprep.subr.bf16.mxu0 0
        %381 = vmatpush1.bf16.msra.mxu0 %v362
        %382 = vmatprep.subr.bf16.mxu0 0
        %383 = vmatpush1.bf16.msra.mxu0 %v361
        %384 = vmatprep.subr.bf16.mxu0 0
        %385 = vmatpush1.bf16.msra.mxu0 %v360
        %386 = vmatprep.subr.bf16.mxu0 0
        %387 = vmatpush1.bf16.msra.mxu0 %v359
        %388 = vmatprep.subr.bf16.mxu0 0
        %389 = vmatpush1.bf16.msra.mxu0 %v358
        %390 = vmatprep.subr.bf16.mxu0 0
        %391 = vmatpush2.bf16.msra.mxu0 0
        %392 = vmatprep.subr.bf16.mxu0 0
        %393 = vmatpush2.bf16.msra.mxu0 0
        %394 = vmatprep.subr.bf16.mxu0 0
        %395 = vmatpush2.bf16.msra.mxu0 0
        %396 = vmatprep.subr.bf16.mxu0 0
        %397 = vmatpush2.bf16.msra.mxu0 0
        %398 = vmatprep.subr.bf16.mxu0 0
        %399 = vmatpush2.bf16.msra.mxu0 0
        %400 = vmatprep.subr.bf16.mxu0 0
        %401 = vmatpush2.bf16.msra.mxu0 0
        %402 = vmatprep.subr.bf16.mxu0 0
        %403 = vmatpush2.bf16.msra.mxu0 0
        %404 = vmatprep.subr.bf16.mxu0 0
        %405 = vmatpush2.bf16.msra.mxu0 0
        %406 = vmatprep.mubr.bf16.mxu0 0
        %407 = vmatmul.mubr.bf16.gmra.mxu0 %v324
        %v408 = vpop.f32.mrf.mxu0
        %v409 = vadd.f32 0.0, %v408
        %v410 = vpop.f32.mrf.mxu0
        %v411 = vpop.f32.mrf.mxu0
        %v412 = vadd.f32 0.0, %v411
        %v413 = vpop.f32.mrf.mxu0
        %414 = vdwg.mxu0
        %v415 = vadd.f32 %v300, %v409
        %v416 = vadd.f32 %v301, %v412
        %417 = vst [vmem:[#allocation2] sm:$0xff] %v415
        %418 = vst [vmem:[#allocation2 + $0x8] sm:$0xff] %v416
        %p419 = scmp.eq.s32.totalorder %s33, 2
        // Predicated region
        $region41: #{tpu_custom_call.1} parent=27 // pred_check
          %p420 = pneg %p419
        $region42: #{tpu_custom_call.1} parent=27 // pred_check_branch
          %422 = sbr.rel (%p420) target = $region44
        $region43: #{tpu_custom_call.1} parent=27 // pred_region
          %v423 = vld [vmem:[#allocation2] sm:$0xff]
          %v424 = vld [vmem:[#allocation2 + $0x8] sm:$0xff]
          %v425 = vpack.c.bf16 %v424, %v423
          %v427 = vunpack.c.l.b16 %v425
          %v428 = vunpack.c.h.b16 %v425
          %v429 = vpack.c.b16 %v427, %v427
          %v430 = vpack.c.b16 %v428, %v428
          %433 = vst [vmem:[%s275] sm:$0xf] %v429
          %434 = vst [vmem:[%s275 + $0x4] sm:$0xf] %v430
          %v435 = vadd.f32 %v423, %v424
          %v436 = vrot.slane %v435, 4
          %v437 = vadd.f32 %v435, %v436
          %v438 = vrot.slane %v437, 2
          %v439 = vadd.f32 %v437, %v438
          %v440 = vrot.slane %v439, 1
          %v441 = vadd.f32 %v439, %v440
          %v442 = vmul.f32 %v423, %v423
          %v443 = vmul.f32 %v424, %v424
          %v444 = vadd.f32 %v442, %v443
          %v445 = vrot.slane %v444, 4
          %v446 = vadd.f32 %v444, %v445
          %v447 = vrot.slane %v446, 2
          %v448 = vadd.f32 %v446, %v447
          %v449 = vrot.slane %v448, 1
          %v450 = vadd.f32 %v448, %v449
          %451 = vst [vmem:[%s282] sm:$0xff] %v441
          %452 = vst [vmem:[%s289] sm:$0xff] %v450
        $region44: #{tpu_custom_call.1} parent=27 // pred_fallthru
          _
        %s453 = sand.u32 %s102, 1
        %s454 = scalar_lea.sflag [#allocation5], %s453
        %s455 = sand.u32 %s102, 1
        %s456 = smul.addr %s455, 8
        %s457 = scalar_lea.vmem [#allocation8], %s456
        %s458 = sand.u32 %s28, 1
        %s459 = scalar_lea.sflag [#allocation10], %s458
        %s460 = sand.u32 %s128, 1
        %s461 = smul.addr %s460, 8
        %s462 = scalar_lea.vmem [#allocation9], %s461
        %s463 = sand.u32 %s28, 1
        %s464 = scalar_lea.sflag [#allocation10], %s463
        %s465 = sand.u32 %s154, 1
        %s466 = smul.addr %s465, 8
        %s467 = scalar_lea.vmem [#allocation11], %s466
        // Predicated region
        $region45: #{tpu_custom_call.1} parent=27 // pred_check
          %p468 = pneg %p112
        $region46: #{tpu_custom_call.1} parent=27 // pred_check_branch
          %470 = sbr.rel (%p468) target = $region48
        $region47: #{tpu_custom_call.1} parent=27 // pred_region
          %s471 = smul.u32 2, %s32
          %s473 = ssub.s32 128, 128
          %474 = vsyncadd %s454, %s473
          %s475 = smul.addr %s471, 64
          %s476 = scalar_lea.hbm %s2, %s475
          %s477 = sshll.u32 %s457, 4
          %s478 = int_to_ptr.vmem [resolvable:$true] %s477
          %483 = dma.vmem_to_hbm [thread:$0]  %s478, 128, %s476, %s454, 64, 64, 4
        $region48: #{tpu_custom_call.1} parent=27 // pred_fallthru
          _
        // Predicated region
        $region49: #{tpu_custom_call.1} parent=27 // pred_check
          %p484 = pneg %p138
        $region50: #{tpu_custom_call.1} parent=27 // pred_check_branch
          %486 = sbr.rel (%p484) target = $region52
        $region51: #{tpu_custom_call.1} parent=27 // pred_region
          %s488 = ssub.s32 128, 128
          %489 = vsyncadd %s459, %s488
          %s490 = smul.addr %s32, 128
          %s491 = scalar_lea.hbm %s3, %s490
          %s493 = sshll.u32 %s462, 4
          %s494 = int_to_ptr.vmem [resolvable:$true] %s493
          %496 = dma.vmem_to_hbm [thread:$0]  %s494, 128, %s491, %s459
        $region52: #{tpu_custom_call.1} parent=27 // pred_fallthru
          _
        // Predicated region
        $region53: #{tpu_custom_call.1} parent=27 // pred_check
          %p497 = pneg %p164
        $region54: #{tpu_custom_call.1} parent=27 // pred_check_branch
          %499 = sbr.rel (%p497) target = $region56
        $region55: #{tpu_custom_call.1} parent=27 // pred_region
          %s501 = ssub.s32 128, 128
          %502 = vsyncadd %s464, %s501
          %s503 = smul.addr %s32, 128
          %s504 = scalar_lea.hbm %s4, %s503
          %s506 = sshll.u32 %s467, 4
          %s507 = int_to_ptr.vmem [resolvable:$true] %s506
          %509 = dma.vmem_to_hbm [thread:$0]  %s507, 128, %s504, %s464
        $region56: #{tpu_custom_call.1} parent=27 // pred_fallthru
          _
      $region28: #{tpu_custom_call.1} parent=5 // pred_fallthru
        _
      %p510 = scmp.le.s32.totalorder 2, %s23
      // Predicated region
      $region57: #{tpu_custom_call.1} parent=5 // pred_check
        %p511 = pneg %p510
      $region58: #{tpu_custom_call.1} parent=5 // pred_check_branch
        %513 = sbr.rel (%p511) target = $region60
      $region59: #{tpu_custom_call.1} parent=5 // pred_region
        %s514 = ssub.s32 %s23, 2
        // Predicated region
        $region61: #{tpu_custom_call.1} parent=59 // pred_check
          %p515 = pneg %p118
        $region62: #{tpu_custom_call.1} parent=59 // pred_check_branch
          %517 = sbr.rel (%p515) target = $region64
        $region63: #{tpu_custom_call.1} parent=59 // pred_region
          %s518 = sand.u32 %s103, 1
          %s519 = scalar_lea.sflag [#allocation5], %s518
          %s520 = sand.u32 %s103, 1
          %s521 = smul.addr %s520, 8
          %s522 = scalar_lea.vmem [#allocation8], %s521
          %523 = dma.done %s519, 128
        $region64: #{tpu_custom_call.1} parent=59 // pred_fallthru
          _
        // Predicated region
        $region65: #{tpu_custom_call.1} parent=59 // pred_check
          %p524 = pneg %p144
        $region66: #{tpu_custom_call.1} parent=59 // pred_check_branch
          %526 = sbr.rel (%p524) target = $region68
        $region67: #{tpu_custom_call.1} parent=59 // pred_region
          %s527 = sand.u32 %s29, 1
          %s528 = scalar_lea.sflag [#allocation10], %s527
          %s529 = sand.u32 %s129, 1
          %s530 = smul.addr %s529, 8
          %s531 = scalar_lea.vmem [#allocation9], %s530
          %532 = dma.done %s528, 128
        $region68: #{tpu_custom_call.1} parent=59 // pred_fallthru
          _
        // Predicated region
        $region69: #{tpu_custom_call.1} parent=59 // pred_check
          %p533 = pneg %p170
        $region70: #{tpu_custom_call.1} parent=59 // pred_check_branch
          %535 = sbr.rel (%p533) target = $region72
        $region71: #{tpu_custom_call.1} parent=59 // pred_region
          %s536 = sand.u32 %s29, 1
          %s537 = scalar_lea.sflag [#allocation10], %s536
          %s538 = sand.u32 %s155, 1
          %s539 = smul.addr %s538, 8
          %s540 = scalar_lea.vmem [#allocation11], %s539
          %541 = dma.done %s537, 128
        $region72: #{tpu_custom_call.1} parent=59 // pred_fallthru
          _
      $region60: #{tpu_custom_call.1} parent=5 // pred_fallthru
        _
    $region6: #{tpu_custom_call.1} parent=1 // loop_footer
      %s27 = sadd.s32 1, %s23
    $region7: #{tpu_custom_call.1} parent=1 // loop_footer_branch
      %22 = sbr.rel target = $region3
    $region8: #{tpu_custom_call.1} parent=1 // loop_exit
      _
    %542 = vsyncpa [#allocation4], 1
    %s543 = scalar_lea.sflag [#allocation4], 1
    %544 = vsyncpa %s543, 1
    %545 = vsyncpa [#allocation7], 1
    %s546 = scalar_lea.sflag [#allocation7], 1
    %547 = vsyncpa %s546, 1
    %548 = vsyncpa [#allocation5], 1
    %s549 = scalar_lea.sflag [#allocation5], 1
    %550 = vsyncpa %s549, 1
    %551 = vsyncpa [#allocation10], 1
    %s552 = scalar_lea.sflag [#allocation10], 1
    %553 = vsyncpa %s552, 1

</llo_original>
